<compile_context>
chip_gen: v7x
topology: tpu7x:2x2x1
jax: 0.10.0
libtpu: 0.0.40
codegen_flags: <defaults>
</compile_context>

<pallas_src>
import jax
import jax.numpy as jnp
from jax.experimental import pallas as pl
from jax.experimental.pallas import tpu as pltpu

LANE = 128          # lane width (last dim alignment)
SUBLANE = 8         # sublane width (second-to-last dim alignment)
MAX_BATCH_TILE = 256


def _round_up(n, m):
    return ((n + m - 1) // m) * m


def _batch_tiling(batch):
    """Return (batch_pad, batch_tile)."""
    bp = _round_up(batch, SUBLANE)
    if bp <= MAX_BATCH_TILE:
        return bp, bp
    bp = _round_up(batch, MAX_BATCH_TILE)
    return bp, MAX_BATCH_TILE


def rnn_seq_kernel(x_ref, h0_ref, w1x_ref, w1h_ref, b1_ref, w2t_ref, b2_ref,
                   out_ref, hlast_ref, h_scratch):
    """One grid step = one timestep for one batch tile.

    grid = (batch_tiles, T); time axis (1) is sequential ("arbitrary"), the
    hidden state is carried in `h_scratch` (f32 VMEM) across timesteps.
    """
    t = pl.program_id(1)

    # (Re-)initialize the carried hidden state at the start of each sequence.
    @pl.when(t == 0)
    def _():
        h_scratch[...] = h0_ref[...].astype(jnp.float32)

    x = x_ref[0].astype(jnp.bfloat16)          # (bt, in_pad)
    h = h_scratch[...]                         # (bt, hid_pad) f32 carry

    # input_layer: cat([x, h], 1) @ W1^T + b1  ==  x @ W1x + h @ W1h + b1
    # bf16 MXU operands, f32 accumulation; bias/ReLU epilogue stays f32 (VPU).
    o = (jnp.dot(x, w1x_ref[...], preferred_element_type=jnp.float32)
         + jnp.dot(h.astype(jnp.bfloat16), w1h_ref[...],
                   preferred_element_type=jnp.float32)
         + b1_ref[...])
    h_new = jnp.maximum(o, 0.0)
    h_scratch[...] = h_new

    # output_layer: h_new @ W2^T + b2
    out = (jnp.dot(h_new.astype(jnp.bfloat16), w2t_ref[...],
                   preferred_element_type=jnp.float32)
           + b2_ref[...])
    out_ref[0] = out.astype(out_ref.dtype)

    # The hlast block index is constant over t, so only the final timestep's
    # value is written back to HBM (aliased with the incoming hidden buffer).
    hlast_ref[...] = h_new.astype(hlast_ref.dtype)


def prepare_params(params, input_size, hidden_size, output_size,
                   compute_dtype=jnp.bfloat16):
    """One-time: split/transpose/pad/cast weights for the kernel (hoisted out
    of the per-step path)."""
    ip = _round_up(input_size, LANE)
    hp = _round_up(hidden_size, LANE)
    op = _round_up(output_size, LANE)
    w1, b1, w2, b2 = params["w1"], params["b1"], params["w2"], params["b2"]

    w1x = jnp.transpose(w1[:, :input_size])     # (input, hidden)
    w1h = jnp.transpose(w1[:, input_size:])     # (hidden, hidden)
    w2t = jnp.transpose(w2)                     # (hidden, output)

    def pad2(a, rows, cols):
        return jnp.pad(a, ((0, rows - a.shape[0]), (0, cols - a.shape[1])))

    return {
        "w1x": pad2(w1x, ip, hp).astype(compute_dtype),
        "w1h": pad2(w1h, hp, hp).astype(compute_dtype),
        "w2t": pad2(w2t, hp, op).astype(compute_dtype),
        "b1": pad2(b1.reshape(1, -1), 1, hp).astype(jnp.float32),
        "b2": pad2(b2.reshape(1, -1), 1, op).astype(jnp.float32),
    }


def rnn_forward_sequence(x_seq, hidden, prepared,
                         input_size, hidden_size, output_size):
    """Run the RNN cell over a whole sequence in ONE pallas_call.

    x_seq:  (T, batch, input_size)
    hidden: (batch, hidden_size)
    Returns (outputs (T, batch, output_size), final hidden (batch, hidden_size)).
    """
    T, batch, _ = x_seq.shape
    ip = _round_up(input_size, LANE)
    hp = _round_up(hidden_size, LANE)
    op = _round_up(output_size, LANE)
    batch_pad, bt = _batch_tiling(batch)
    nb = batch_pad // bt
    dtype = x_seq.dtype

    # Zero-pad activations to aligned shapes (padding lanes stay exactly zero).
    x_p = jnp.pad(x_seq, ((0, 0), (0, batch_pad - batch), (0, ip - input_size)))
    h_p = jnp.pad(hidden.astype(dtype),
                  ((0, batch_pad - batch), (0, hp - hidden_size)))

    w1x, w1h, w2t = prepared["w1x"], prepared["w1h"], prepared["w2t"]
    b1, b2 = prepared["b1"], prepared["b2"]

    out_shapes = (
        jax.ShapeDtypeStruct((T, batch_pad, op), dtype),   # all outputs
        jax.ShapeDtypeStruct((batch_pad, hp), dtype),      # final hidden
    )

    grid_spec = pltpu.PrefetchScalarGridSpec(
        num_scalar_prefetch=0,
        grid=(nb, T),
        in_specs=[
            pl.BlockSpec((1, bt, ip), lambda b, t: (t, b, 0)),   # x_seq
            pl.BlockSpec((bt, hp), lambda b, t: (b, 0)),         # h0
            pl.BlockSpec((ip, hp), lambda b, t: (0, 0)),         # W1x (resident)
            pl.BlockSpec((hp, hp), lambda b, t: (0, 0)),         # W1h (resident)
            pl.BlockSpec((1, hp), lambda b, t: (0, 0)),          # b1  (resident)
            pl.BlockSpec((hp, op), lambda b, t: (0, 0)),         # W2t (resident)
            pl.BlockSpec((1, op), lambda b, t: (0, 0)),          # b2  (resident)
        ],
        out_specs=(
            pl.BlockSpec((1, bt, op), lambda b, t: (t, b, 0)),   # outputs
            pl.BlockSpec((bt, hp), lambda b, t: (b, 0)),         # final hidden
        ),
        scratch_shapes=[pltpu.VMEM((bt, hp), jnp.float32)],      # hidden carry
    )

    itemsize = jnp.dtype(dtype).itemsize
    flops = 2 * T * batch_pad * (ip + hp) * hp + 2 * T * batch_pad * hp * op
    bytes_accessed = (
        T * batch_pad * ip * itemsize          # x
        + 2 * batch_pad * hp * itemsize        # h0 in + h_last out
        + 2 * (ip * hp + hp * hp + hp * op)    # bf16 weights
        + 4 * (hp + op)                        # biases
        + T * batch_pad * op * itemsize        # outputs
    )
    cost = pl.CostEstimate(flops=int(flops), transcendentals=0,
                           bytes_accessed=int(bytes_accessed))

    # NOTE(v7x): for large hidden sizes budget resident bf16 weights against
    # 64 MiB VMEM and set vmem_limit_bytes / tile the hidden (K) dim; at these
    # padded sizes (3 x 128x128 bf16 ~ 96 KiB) the default limit is ample.
    out_p, h_last_p = pl.pallas_call(
        rnn_seq_kernel,
        out_shape=out_shapes,
        grid_spec=grid_spec,
        input_output_aliases={1: 1},   # alias incoming hidden with final hidden
        compiler_params=pltpu.CompilerParams(
            dimension_semantics=("parallel", "arbitrary")),
        cost_estimate=cost,
    )(x_p, h_p, w1x, w1h, b1, w2t, b2)

    outputs = out_p[:, :batch, :output_size]
    h_last = h_last_p[:batch, :hidden_size]
    return outputs, h_last


def rnn_forward(x, hidden, prepared, input_size, hidden_size, output_size):
    """Mirror of RNN.forward(x, hidden) -> (output, h): a single cell step."""
    out_seq, h = rnn_forward_sequence(x[None], hidden, prepared,
                                      input_size, hidden_size, output_size)
    return out_seq[0], h


def hidden_init(hidden_size, dtype=jnp.float32):
    return jnp.zeros((1, hidden_size), dtype)


def init_params(key, input_size, hidden_size, output_size, dtype=jnp.float32):
    """Deterministic init matching nn.Linear shapes (uniform +-1/sqrt(fan_in))."""
    k1, k2, k3, k4 = jax.random.split(key, 4)
    fan1 = input_size + hidden_size
    lim1 = 1.0 / jnp.sqrt(jnp.array(fan1, dtype))
    fan2 = hidden_size
    lim2 = 1.0 / jnp.sqrt(jnp.array(fan2, dtype))
    return {
        "w1": jax.random.uniform(k1, (hidden_size, fan1), dtype, -lim1, lim1),
        "b1": jax.random.uniform(k2, (hidden_size,), dtype, -lim1, lim1),
        "w2": jax.random.uniform(k3, (output_size, hidden_size), dtype, -lim2, lim2),
        "b2": jax.random.uniform(k4, (output_size,), dtype, -lim2, lim2),
    }


if __name__ == "__main__":
    input_size, hidden_size, output_size = 8, 32, 16
    batch, T = 2, 8

    key = jax.random.PRNGKey(0)
    kp, kx, kh, ks = jax.random.split(key, 4)
    params = init_params(kp, input_size, hidden_size, output_size)
    prepared = prepare_params(params, input_size, hidden_size, output_size)

    x = jax.random.normal(kx, (batch, input_size), jnp.float32)
    hidden = jax.random.normal(kh, (batch, hidden_size), jnp.float32)

    # --- single-step (matches the PyTorch module's forward) -----------------
    step_fn = jax.jit(lambda xx, hh, pp: rnn_forward(
        xx, hh, pp, input_size, hidden_size, output_size))
    output, h_new = step_fn(x, hidden, prepared)
    jax.block_until_ready((output, h_new))

    cat = jnp.concatenate([x, hidden], axis=1)
    o_ref = cat @ params["w1"].T + params["b1"]
    h_ref = jnp.maximum(o_ref, 0.0)
    out_ref = h_ref @ params["w2"].T + params["b2"]
    # bf16 MXU operands -> loosened tolerance vs the f32 reference.
    assert jnp.allclose(output, out_ref, atol=2e-2, rtol=2e-2), "output mismatch"
    assert jnp.allclose(h_new, h_ref, atol=2e-2, rtol=2e-2), "hidden mismatch"

    # --- fused sequence (time loop inside the kernel) ------------------------
    x_seq = jax.random.normal(ks, (T, batch, input_size), jnp.float32)
    seq_fn = jax.jit(lambda xs, hh, pp: rnn_forward_sequence(
        xs, hh, pp, input_size, hidden_size, output_size))
    out_seq, h_last = seq_fn(x_seq, hidden, prepared)
    jax.block_until_ready((out_seq, h_last))

    h_r = hidden
    outs = []
    for t in range(T):
        cat_t = jnp.concatenate([x_seq[t], h_r], axis=1)
        o_t = cat_t @ params["w1"].T + params["b1"]
        h_r = jnp.maximum(o_t, 0.0)
        outs.append(h_r @ params["w2"].T + params["b2"])
    out_ref_seq = jnp.stack(outs)
    assert jnp.allclose(out_seq, out_ref_seq, atol=2e-2, rtol=2e-2), "seq output mismatch"
    assert jnp.allclose(h_last, h_r, atol=2e-2, rtol=2e-2), "seq hidden mismatch"

    print("KERNEL_OK")
</pallas_src>

<mosaic_0001>
module attributes {stable_mosaic.version = 11 : i64} {
  func.func @rnn_seq_kernel(%arg0: i32, %arg1: i32, %arg2: memref<1x8x128xf32, #tpu.memory_space<vmem>>, %arg3: memref<8x128xf32, #tpu.memory_space<vmem>>, %arg4: memref<128x128xbf16, #tpu.memory_space<vmem>>, %arg5: memref<128x128xbf16, #tpu.memory_space<vmem>>, %arg6: memref<1x128xf32, #tpu.memory_space<vmem>>, %arg7: memref<128x128xbf16, #tpu.memory_space<vmem>>, %arg8: memref<1x128xf32, #tpu.memory_space<vmem>>, %arg9: memref<1x8x128xf32, #tpu.memory_space<vmem>>, %arg10: memref<8x128xf32, #tpu.memory_space<vmem>>, %arg11: memref<8x128xf32, #tpu.memory_space<vmem>>) attributes {dimension_semantics = [#tpu.dimension_semantics<parallel>, #tpu.dimension_semantics<arbitrary>], iteration_bounds = array<i64: 1, 1>, scalar_prefetch = 0 : i64, scratch_operands = 1 : i64, tpu.core_type = #tpu.core_type<tc>, window_params = [{transform_indices = @transform_0, window_bounds = array<i64: 1, 8, 128>}, {transform_indices = @transform_1, window_bounds = array<i64: 8, 128>}, {pipeline_mode = #tpu.pipeline_mode<synchronous>, transform_indices = @transform_2, window_bounds = array<i64: 128, 128>}, {pipeline_mode = #tpu.pipeline_mode<synchronous>, transform_indices = @transform_3, window_bounds = array<i64: 128, 128>}, {pipeline_mode = #tpu.pipeline_mode<synchronous>, transform_indices = @transform_4, window_bounds = array<i64: 1, 128>}, {pipeline_mode = #tpu.pipeline_mode<synchronous>, transform_indices = @transform_5, window_bounds = array<i64: 128, 128>}, {pipeline_mode = #tpu.pipeline_mode<synchronous>, transform_indices = @transform_6, window_bounds = array<i64: 1, 128>}, {transform_indices = @transform_7, window_bounds = array<i64: 1, 8, 128>}, {transform_indices = @transform_8, window_bounds = array<i64: 8, 128>}]} {
    %c0_i32 = arith.constant 0 : i32
    %0 = arith.cmpi eq, %arg1, %c0_i32 : i32
    %1 = arith.extui %0 : i1 to i32
    %c0_i32_0 = arith.constant 0 : i32
    %2 = arith.cmpi ne, %1, %c0_i32_0 : i32
    scf.if %2 {
      %c0_25 = arith.constant 0 : index
      %c0_26 = arith.constant 0 : index
      %29 = vector.load %arg3[%c0_25, %c0_26] : memref<8x128xf32, #tpu.memory_space<vmem>>, vector<8x128xf32>
      %c0_27 = arith.constant 0 : index
      %c0_28 = arith.constant 0 : index
      %30 = vector.load %arg11[%c0_27, %c0_28] : memref<8x128xf32, #tpu.memory_space<vmem>>, vector<8x128xf32>
      tpu.vector_store %arg11[%c0_27, %c0_28], %29 {strides = array<i32>} : memref<8x128xf32, #tpu.memory_space<vmem>>, vector<8x128xf32>,
    } else {
    }
    %c0 = arith.constant 0 : index
    %c0_1 = arith.constant 0 : index
    %c0_2 = arith.constant 0 : index
    %3 = vector.load %arg2[%c0, %c0_1, %c0_2] : memref<1x8x128xf32, #tpu.memory_space<vmem>>, vector<1x8x128xf32>
    %4 = vector.shape_cast %3 : vector<1x8x128xf32> to vector<8x128xf32>
    %5 = arith.truncf %4 : vector<8x128xf32> to vector<8x128xbf16>
    %c0_3 = arith.constant 0 : index
    %c0_4 = arith.constant 0 : index
    %6 = vector.load %arg11[%c0_3, %c0_4] : memref<8x128xf32, #tpu.memory_space<vmem>>, vector<8x128xf32>
    %c0_5 = arith.constant 0 : index
    %c0_6 = arith.constant 0 : index
    %7 = vector.load %arg4[%c0_5, %c0_6] : memref<128x128xbf16, #tpu.memory_space<vmem>>, vector<128x128xbf16>
    %cst = arith.constant dense<0.000000e+00> : vector<8x128xf32>
    %8 = tpu.matmul %5, %7, %cst {dimension_numbers = #tpu.dot_dimension_numbers<[1], [0], [0], [1], [0, 0, 1, 1], [], []>} : vector<8x128xbf16>, vector<128x128xbf16>, vector<8x128xf32> -> vector<8x128xf32>
    %9 = arith.truncf %6 : vector<8x128xf32> to vector<8x128xbf16>
    %c0_7 = arith.constant 0 : index
    %c0_8 = arith.constant 0 : index
    %10 = vector.load %arg5[%c0_7, %c0_8] : memref<128x128xbf16, #tpu.memory_space<vmem>>, vector<128x128xbf16>
    %cst_9 = arith.constant dense<0.000000e+00> : vector<8x128xf32>
    %11 = tpu.matmul %9, %10, %cst_9 {dimension_numbers = #tpu.dot_dimension_numbers<[1], [0], [0], [1], [0, 0, 1, 1], [], []>} : vector<8x128xbf16>, vector<128x128xbf16>, vector<8x128xf32> -> vector<8x128xf32>
    %12 = arith.addf %8, %11 : vector<8x128xf32>
    %c0_10 = arith.constant 0 : index
    %c0_11 = arith.constant 0 : index
    %13 = vector.load %arg6[%c0_10, %c0_11] : memref<1x128xf32, #tpu.memory_space<vmem>>, vector<1x128xf32>
    %14 = vector.broadcast %13 : vector<1x128xf32> to vector<8x128xf32>
    %15 = arith.addf %12, %14 : vector<8x128xf32>
    %cst_12 = arith.constant 0.000000e+00 : f32
    %16 = vector.broadcast %cst_12 : f32 to vector<8x128xf32>
    %17 = arith.maximumf %15, %16 : vector<8x128xf32>
    %c0_13 = arith.constant 0 : index
    %c0_14 = arith.constant 0 : index
    %18 = vector.load %arg11[%c0_13, %c0_14] : memref<8x128xf32, #tpu.memory_space<vmem>>, vector<8x128xf32>
    tpu.vector_store %arg11[%c0_13, %c0_14], %17 {strides = array<i32>} : memref<8x128xf32, #tpu.memory_space<vmem>>, vector<8x128xf32>,
    %19 = arith.truncf %17 : vector<8x128xf32> to vector<8x128xbf16>
    %c0_15 = arith.constant 0 : index
    %c0_16 = arith.constant 0 : index
    %20 = vector.load %arg7[%c0_15, %c0_16] : memref<128x128xbf16, #tpu.memory_space<vmem>>, vector<128x128xbf16>
    %cst_17 = arith.constant dense<0.000000e+00> : vector<8x128xf32>
    %21 = tpu.matmul %19, %20, %cst_17 {dimension_numbers = #tpu.dot_dimension_numbers<[1], [0], [0], [1], [0, 0, 1, 1], [], []>} : vector<8x128xbf16>, vector<128x128xbf16>, vector<8x128xf32> -> vector<8x128xf32>
    %c0_18 = arith.constant 0 : index
    %c0_19 = arith.constant 0 : index
    %22 = vector.load %arg8[%c0_18, %c0_19] : memref<1x128xf32, #tpu.memory_space<vmem>>, vector<1x128xf32>
    %23 = vector.broadcast %22 : vector<1x128xf32> to vector<8x128xf32>
    %24 = arith.addf %21, %23 : vector<8x128xf32>
    %c0_20 = arith.constant 0 : index
    %c0_21 = arith.constant 0 : index
    %c0_22 = arith.constant 0 : index
    %25 = vector.load %arg9[%c0_20, %c0_21, %c0_22] : memref<1x8x128xf32, #tpu.memory_space<vmem>>, vector<1x8x128xf32>
    %26 = vector.shape_cast %25 : vector<1x8x128xf32> to vector<8x128xf32>
    %27 = vector.shape_cast %24 : vector<8x128xf32> to vector<1x8x128xf32>
    tpu.vector_store %arg9[%c0_20, %c0_21, %c0_22], %27 {strides = array<i32>} : memref<1x8x128xf32, #tpu.memory_space<vmem>>, vector<1x8x128xf32>,
    %c0_23 = arith.constant 0 : index
    %c0_24 = arith.constant 0 : index
    %28 = vector.load %arg10[%c0_23, %c0_24] : memref<8x128xf32, #tpu.memory_space<vmem>>, vector<8x128xf32>
    tpu.vector_store %arg10[%c0_23, %c0_24], %17 {strides = array<i32>} : memref<8x128xf32, #tpu.memory_space<vmem>>, vector<8x128xf32>,
    return
  }
  func.func @transform_0(%arg0: i32, %arg1: i32) -> (i32, i32, i32) {
    %c0_i32 = arith.constant 0 : i32
    %c0_i32_0 = arith.constant 0 : i32
    return %arg1, %arg0, %c0_i32 : i32, i32, i32
  }
  func.func @transform_1(%arg0: i32, %arg1: i32) -> (i32, i32) {
    %c0_i32 = arith.constant 0 : i32
    %c0_i32_0 = arith.constant 0 : i32
    return %arg0, %c0_i32 : i32, i32
  }
  func.func @transform_2(%arg0: i32, %arg1: i32) -> (i32, i32) {
    %c0_i32 = arith.constant 0 : i32
    %c0_i32_0 = arith.constant 0 : i32
    %c0_i32_1 = arith.constant 0 : i32
    return %c0_i32, %c0_i32_0 : i32, i32
  }
  func.func @transform_3(%arg0: i32, %arg1: i32) -> (i32, i32) {
    %c0_i32 = arith.constant 0 : i32
    %c0_i32_0 = arith.constant 0 : i32
    %c0_i32_1 = arith.constant 0 : i32
    return %c0_i32, %c0_i32_0 : i32, i32
  }
  func.func @transform_4(%arg0: i32, %arg1: i32) -> (i32, i32) {
    %c0_i32 = arith.constant 0 : i32
    %c0_i32_0 = arith.constant 0 : i32
    %c0_i32_1 = arith.constant 0 : i32
    return %c0_i32, %c0_i32_0 : i32, i32
  }
  func.func @transform_5(%arg0: i32, %arg1: i32) -> (i32, i32) {
    %c0_i32 = arith.constant 0 : i32
    %c0_i32_0 = arith.constant 0 : i32
    %c0_i32_1 = arith.constant 0 : i32
    return %c0_i32, %c0_i32_0 : i32, i32
  }
  func.func @transform_6(%arg0: i32, %arg1: i32) -> (i32, i32) {
    %c0_i32 = arith.constant 0 : i32
    %c0_i32_0 = arith.constant 0 : i32
    %c0_i32_1 = arith.constant 0 : i32
    return %c0_i32, %c0_i32_0 : i32, i32
  }
  func.func @transform_7(%arg0: i32, %arg1: i32) -> (i32, i32, i32) {
    %c0_i32 = arith.constant 0 : i32
    %c0_i32_0 = arith.constant 0 : i32
    return %arg1, %arg0, %c0_i32 : i32, i32, i32
  }
  func.func @transform_8(%arg0: i32, %arg1: i32) -> (i32, i32) {
    %c0_i32 = arith.constant 0 : i32
    %c0_i32_0 = arith.constant 0 : i32
    return %arg0, %c0_i32 : i32, i32
  }
}

</mosaic_0001>

<llo_original>
// kernel: _lambda_.1
$region0: #{_lambda_.1}
  #allocation0 [shape = 'u32[]', space=smem, size = 0x4, offset = 0x4, fixed_abs, tag = 'smem constant byte address 0x4 - core index']
  #allocation1 [shape = 'u32[144,128]{1,0:T(1,128)}', space=vmem, size = 0x12000, scoped, tag = 'internal scratch']
  #allocation2 [shape = 'f32[8,128]{1,0:T(8,128)}', space=vmem, size = 0x1000, scoped, tag = 'scratch operand']
  %s0 = inlined_call_operand.vmem [shape: f32[1,8,128], index: 0, kind: input, shape index: {}]
  %s1 = inlined_call_operand.vmem [shape: f32[8,128], index: 1, kind: input, shape index: {}, may-alias: {1,8}]
  %s2 = inlined_call_operand.hbm [shape: bf16[128,128], index: 2, kind: input, shape index: {}]
  %s3 = inlined_call_operand.hbm [shape: bf16[128,128], index: 3, kind: input, shape index: {}]
  %s4 = inlined_call_operand.vmem [shape: f32[1,128], index: 4, kind: input, shape index: {}]
  %s5 = inlined_call_operand.hbm [shape: bf16[128,128], index: 5, kind: input, shape index: {}]
  %s6 = inlined_call_operand.vmem [shape: f32[1,128], index: 6, kind: input, shape index: {}]
  %s7 = inlined_call_operand.vmem [shape: f32[1,8,128], index: 7, kind: output, shape index: {0}]
  %s8 = inlined_call_operand.vmem [shape: f32[8,128], index: 8, kind: output, shape index: {1}, may-alias: {1,8}]
  %9 = xla_tuple %s7, %s8
  %s10 = sld [smem:[#allocation0]]
  $region62: #{_lambda_.1} parent=0
    _
  %s12 = ssub.s32 1, %s10
  %s13 = scalar_select 0, %s12, %s10
  $region1: #{_lambda_.1} parent=0
    #allocation3 [shape = 'u8[32768]{0}', space=vmem, size = 0x8000, scoped, tag = 'input window, operand 2, single buffered']
    #allocation4 [shape = 's32[1]{0}', space=sflag, size = 0x4, scoped, tag = 'scoped memory for _lambda_.1']
    #allocation5 [shape = 'u8[32768]{0}', space=vmem, size = 0x8000, scoped, tag = 'input window, operand 3, single buffered']
    #allocation6 [shape = 's32[1]{0}', space=sflag, size = 0x4, scoped, tag = 'scoped memory for _lambda_.1']
    #allocation7 [shape = 'u8[32768]{0}', space=vmem, size = 0x8000, scoped, tag = 'input window, operand 5, single buffered']
    %14 = vsyncpa [#allocation4], 0
    %15 = vsyncpa [#allocation6], 0
    // Predicated region
    $region2: #{_lambda_.1} parent=1 // pred_check
      _
    $region3: #{_lambda_.1} parent=1 // pred_check_branch
      %17 = sbr.rel (0) target = $region5
    $region4: #{_lambda_.1} parent=1 // pred_region
      _
    $region5: #{_lambda_.1} parent=1 // pred_fallthru
      _
    // Predicated region
    $region6: #{_lambda_.1} parent=1 // pred_check
      _
    $region7: #{_lambda_.1} parent=1 // pred_check_branch
      %19 = sbr.rel (0) target = $region9
    $region8: #{_lambda_.1} parent=1 // pred_region
      _
    $region9: #{_lambda_.1} parent=1 // pred_fallthru
      _
    // Predicated region
    $region10: #{_lambda_.1} parent=1 // pred_check
      _
    $region11: #{_lambda_.1} parent=1 // pred_check_branch
      %21 = sbr.rel (0) target = $region13
    $region12: #{_lambda_.1} parent=1 // pred_region
      %s23 = ssub.s32 1024, 1024
      %24 = vsyncadd [#allocation4], %s23
      %s25 = sshll.u32 [#allocation3], 4
      %s26 = int_to_ptr.vmem [resolvable:$true] %s25
      %31 = dma.hbm_to_vmem [thread:$0]  %s2, 1024, %s26, [#allocation4], 64, 64, 4
    $region13: #{_lambda_.1} parent=1 // pred_fallthru
      _
    // Predicated region
    $region14: #{_lambda_.1} parent=1 // pred_check
      _
    $region15: #{_lambda_.1} parent=1 // pred_check_branch
      %33 = sbr.rel (0) target = $region17
    $region16: #{_lambda_.1} parent=1 // pred_region
      %s35 = ssub.s32 1024, 1024
      %36 = vsyncadd [#allocation6], %s35
      %s37 = sshll.u32 [#allocation5], 4
      %s38 = int_to_ptr.vmem [resolvable:$true] %s37
      %43 = dma.hbm_to_vmem [thread:$0]  %s3, 1024, %s38, [#allocation6], 64, 64, 4
    $region17: #{_lambda_.1} parent=1 // pred_fallthru
      _
    // Predicated region
    $region18: #{_lambda_.1} parent=1 // pred_check
      _
    $region19: #{_lambda_.1} parent=1 // pred_check_branch
      %45 = sbr.rel (0) target = $region21
    $region20: #{_lambda_.1} parent=1 // pred_region
      _
    $region21: #{_lambda_.1} parent=1 // pred_fallthru
      _
    // Predicated region
    $region22: #{_lambda_.1} parent=1 // pred_check
      _
    $region23: #{_lambda_.1} parent=1 // pred_check_branch
      %47 = sbr.rel (0) target = $region25
    $region24: #{_lambda_.1} parent=1 // pred_region
      %s49 = ssub.s32 1024, 1024
      %50 = vsyncadd [#allocation6], %s49
      %s51 = sshll.u32 [#allocation7], 4
      %s52 = int_to_ptr.vmem [resolvable:$true] %s51
      %57 = dma.hbm_to_vmem [thread:$0]  %s5, 1024, %s52, [#allocation6], 64, 64, 4
    $region25: #{_lambda_.1} parent=1 // pred_fallthru
      _
    // Predicated region
    $region26: #{_lambda_.1} parent=1 // pred_check
      _
    $region27: #{_lambda_.1} parent=1 // pred_check_branch
      %59 = sbr.rel (0) target = $region29
    $region28: #{_lambda_.1} parent=1 // pred_region
      _
    $region29: #{_lambda_.1} parent=1 // pred_fallthru
      _
    // Predicated region
    $region30: #{_lambda_.1} parent=1 // pred_check
      _
    $region31: #{_lambda_.1} parent=1 // pred_check_branch
      %61 = sbr.rel (0) target = $region33
    $region32: #{_lambda_.1} parent=1 // pred_region
      %62 = dma.done [#allocation4], 1024
    $region33: #{_lambda_.1} parent=1 // pred_fallthru
      _
    // Predicated region
    $region34: #{_lambda_.1} parent=1 // pred_check
      _
    $region35: #{_lambda_.1} parent=1 // pred_check_branch
      %64 = sbr.rel (0) target = $region37
    $region36: #{_lambda_.1} parent=1 // pred_region
      %65 = dma.done [#allocation6], 1024
    $region37: #{_lambda_.1} parent=1 // pred_fallthru
      _
    // Predicated region
    $region38: #{_lambda_.1} parent=1 // pred_check
      _
    $region39: #{_lambda_.1} parent=1 // pred_check_branch
      %67 = sbr.rel (0) target = $region41
    $region40: #{_lambda_.1} parent=1 // pred_region
      %68 = dma.done [#allocation6], 1024
    $region41: #{_lambda_.1} parent=1 // pred_fallthru
      _
    %p70 = scmp.eq.s32.totalorder 0, 0
    // Predicated region
    $region42: #{_lambda_.1} parent=1 // pred_check
      %p71 = pneg %p70
    $region43: #{_lambda_.1} parent=1 // pred_check_branch
      %73 = sbr.rel (%p71) target = $region45
    $region44: #{_lambda_.1} parent=1 // pred_region
      %v74 = vld [vmem:[%s1] sm:$0xff]
      %75 = vst [vmem:[#allocation2] sm:$0xff] %v74
    $region45: #{_lambda_.1} parent=1 // pred_fallthru
      _
    %v76 = vld [vmem:[%s0] sm:$0xff]
    %v77 = vpack.c.bf16 %v76, %v76
    %v78 = vld [vmem:[#allocation2] sm:$0xff]
    %v79 = vld [vmem:[#allocation3] sm:$0xf]
    %v80 = vld [vmem:[#allocation3 + $0x4] sm:$0xf]
    %v81 = vld [vmem:[#allocation3 + $0x8] sm:$0xf]
    %v82 = vld [vmem:[#allocation3 + $0xc] sm:$0xf]
    %v83 = vld [vmem:[#allocation3 + $0x10] sm:$0xf]
    %v84 = vld [vmem:[#allocation3 + $0x14] sm:$0xf]
    %v85 = vld [vmem:[#allocation3 + $0x18] sm:$0xf]
    %v86 = vld [vmem:[#allocation3 + $0x1c] sm:$0xf]
    %v87 = vld [vmem:[#allocation3 + $0x20] sm:$0xf]
    %v88 = vld [vmem:[#allocation3 + $0x24] sm:$0xf]
    %v89 = vld [vmem:[#allocation3 + $0x28] sm:$0xf]
    %v90 = vld [vmem:[#allocation3 + $0x2c] sm:$0xf]
    %v91 = vld [vmem:[#allocation3 + $0x30] sm:$0xf]
    %v92 = vld [vmem:[#allocation3 + $0x34] sm:$0xf]
    %v93 = vld [vmem:[#allocation3 + $0x38] sm:$0xf]
    %v94 = vld [vmem:[#allocation3 + $0x3c] sm:$0xf]
    %v95 = vpack.c.bf16 %v78, %v78
    %v96 = vld [vmem:[#allocation5] sm:$0xf]
    %v97 = vld [vmem:[#allocation5 + $0x4] sm:$0xf]
    %v98 = vld [vmem:[#allocation5 + $0x8] sm:$0xf]
    %v99 = vld [vmem:[#allocation5 + $0xc] sm:$0xf]
    %v100 = vld [vmem:[#allocation5 + $0x10] sm:$0xf]
    %v101 = vld [vmem:[#allocation5 + $0x14] sm:$0xf]
    %v102 = vld [vmem:[#allocation5 + $0x18] sm:$0xf]
    %v103 = vld [vmem:[#allocation5 + $0x1c] sm:$0xf]
    %v104 = vld [vmem:[#allocation5 + $0x20] sm:$0xf]
    %v105 = vld [vmem:[#allocation5 + $0x24] sm:$0xf]
    %v106 = vld [vmem:[#allocation5 + $0x28] sm:$0xf]
    %v107 = vld [vmem:[#allocation5 + $0x2c] sm:$0xf]
    %v108 = vld [vmem:[#allocation5 + $0x30] sm:$0xf]
    %v109 = vld [vmem:[#allocation5 + $0x34] sm:$0xf]
    %v110 = vld [vmem:[#allocation5 + $0x38] sm:$0xf]
    %v111 = vld [vmem:[#allocation5 + $0x3c] sm:$0xf]
    %v128 = vunpack.c.l.b16 %v96
    %v129 = vunpack.c.l.b16 %v97
    %v130 = vunpack.c.l.b16 %v98
    %v131 = vunpack.c.l.b16 %v99
    %v132 = vunpack.c.l.b16 %v100
    %v133 = vunpack.c.l.b16 %v101
    %v134 = vunpack.c.l.b16 %v102
    %v135 = vunpack.c.l.b16 %v103
    %v136 = vunpack.c.l.b16 %v104
    %v137 = vunpack.c.l.b16 %v105
    %v138 = vunpack.c.l.b16 %v106
    %v139 = vunpack.c.l.b16 %v107
    %v140 = vunpack.c.l.b16 %v108
    %v141 = vunpack.c.l.b16 %v109
    %v142 = vunpack.c.l.b16 %v110
    %v143 = vunpack.c.l.b16 %v111
    %v144 = vpack.c.b16 %v129, %v128
    %v145 = vpack.c.b16 %v131, %v130
    %v146 = vpack.c.b16 %v133, %v132
    %v147 = vpack.c.b16 %v135, %v134
    %v148 = vpack.c.b16 %v137, %v136
    %v149 = vpack.c.b16 %v139, %v138
    %v150 = vpack.c.b16 %v141, %v140
    %v151 = vpack.c.b16 %v143, %v142
    %160 = vmatprep.subr.bf16.mxu0 0
    %161 = vmatpush1.bf16.msra.mxu0 %v144
    %162 = vmatprep.subr.bf16.mxu0 0
    %163 = vmatpush1.bf16.msra.mxu0 %v145
    %164 = vmatprep.subr.bf16.mxu0 0
    %165 = vmatpush1.bf16.msra.mxu0 %v146
    %166 = vmatprep.subr.bf16.mxu0 0
    %167 = vmatpush1.bf16.msra.mxu0 %v147
    %168 = vmatprep.subr.bf16.mxu0 0
    %169 = vmatpush1.bf16.msra.mxu0 %v148
    %170 = vmatprep.subr.bf16.mxu0 0
    %171 = vmatpush1.bf16.msra.mxu0 %v149
    %172 = vmatprep.subr.bf16.mxu0 0
    %173 = vmatpush1.bf16.msra.mxu0 %v150
    %174 = vmatprep.subr.bf16.mxu0 0
    %175 = vmatpush1.bf16.msra.mxu0 %v151
    %176 = vmatprep.subr.bf16.mxu0 0
    %177 = vmatpush1.bf16.msra.mxu0 0
    %178 = vmatprep.subr.bf16.mxu0 0
    %179 = vmatpush1.bf16.msra.mxu0 0
    %180 = vmatprep.subr.bf16.mxu0 0
    %181 = vmatpush1.bf16.msra.mxu0 0
    %182 = vmatprep.subr.bf16.mxu0 0
    %183 = vmatpush1.bf16.msra.mxu0 0
    %184 = vmatprep.subr.bf16.mxu0 0
    %185 = vmatpush1.bf16.msra.mxu0 0
    %186 = vmatprep.subr.bf16.mxu0 0
    %187 = vmatpush1.bf16.msra.mxu0 0
    %188 = vmatprep.subr.bf16.mxu0 0
    %189 = vmatpush1.bf16.msra.mxu0 0
    %190 = vmatprep.subr.bf16.mxu0 0
    %191 = vmatpush1.bf16.msra.mxu0 0
    %192 = vmatprep.mubr.bf16.mxu0 0
    %193 = vmatmul.mubr.bf16.gmra.mrb[0].mxu0 %v95
    %v194 = vpop.f32.mrb[0].mxu0
    %v195 = vadd.f32 0.0, %v194
    %v196 = vpop.f32.mrb[0].mxu0
    %v197 = vpop.f32.mrb[0].mxu0
    %v198 = vpop.f32.mrb[0].mxu0
    %199 = vdwg.mxu0
    %v216 = vunpack.c.l.b16 %v79
    %v217 = vunpack.c.l.b16 %v80
    %v218 = vunpack.c.l.b16 %v81
    %v219 = vunpack.c.l.b16 %v82
    %v220 = vunpack.c.l.b16 %v83
    %v221 = vunpack.c.l.b16 %v84
    %v222 = vunpack.c.l.b16 %v85
    %v223 = vunpack.c.l.b16 %v86
    %v224 = vunpack.c.l.b16 %v87
    %v225 = vunpack.c.l.b16 %v88
    %v226 = vunpack.c.l.b16 %v89
    %v227 = vunpack.c.l.b16 %v90
    %v228 = vunpack.c.l.b16 %v91
    %v229 = vunpack.c.l.b16 %v92
    %v230 = vunpack.c.l.b16 %v93
    %v231 = vunpack.c.l.b16 %v94
    %v232 = vpack.c.b16 %v217, %v216
    %v233 = vpack.c.b16 %v219, %v218
    %v234 = vpack.c.b16 %v221, %v220
    %v235 = vpack.c.b16 %v223, %v222
    %v236 = vpack.c.b16 %v225, %v224
    %v237 = vpack.c.b16 %v227, %v226
    %v238 = vpack.c.b16 %v229, %v228
    %v239 = vpack.c.b16 %v231, %v230
    %248 = vmatprep.subr.bf16.mxu0 0
    %249 = vmatpush1.bf16.msra.mxu0 %v232
    %250 = vmatprep.subr.bf16.mxu0 0
    %251 = vmatpush1.bf16.msra.mxu0 %v233
    %252 = vmatprep.subr.bf16.mxu0 0
    %253 = vmatpush1.bf16.msra.mxu0 %v234
    %254 = vmatprep.subr.bf16.mxu0 0
    %255 = vmatpush1.bf16.msra.mxu0 %v235
    %256 = vmatprep.subr.bf16.mxu0 0
    %257 = vmatpush1.bf16.msra.mxu0 %v236
    %258 = vmatprep.subr.bf16.mxu0 0
    %259 = vmatpush1.bf16.msra.mxu0 %v237
    %260 = vmatprep.subr.bf16.mxu0 0
    %261 = vmatpush1.bf16.msra.mxu0 %v238
    %262 = vmatprep.subr.bf16.mxu0 0
    %263 = vmatpush1.bf16.msra.mxu0 %v239
    %264 = vmatprep.subr.bf16.mxu0 0
    %265 = vmatpush1.bf16.msra.mxu0 0
    %266 = vmatprep.subr.bf16.mxu0 0
    %267 = vmatpush1.bf16.msra.mxu0 0
    %268 = vmatprep.subr.bf16.mxu0 0
    %269 = vmatpush1.bf16.msra.mxu0 0
    %270 = vmatprep.subr.bf16.mxu0 0
    %271 = vmatpush1.bf16.msra.mxu0 0
    %272 = vmatprep.subr.bf16.mxu0 0
    %273 = vmatpush1.bf16.msra.mxu0 0
    %274 = vmatprep.subr.bf16.mxu0 0
    %275 = vmatpush1.bf16.msra.mxu0 0
    %276 = vmatprep.subr.bf16.mxu0 0
    %277 = vmatpush1.bf16.msra.mxu0 0
    %278 = vmatprep.subr.bf16.mxu0 0
    %279 = vmatpush1.bf16.msra.mxu0 0
    %280 = vmatprep.mubr.bf16.mxu0 0
    %281 = vmatmul.mubr.bf16.gmra.mrb[0].mxu0 %v77
    %v282 = vpop.f32.mrb[0].mxu0
    %v283 = vadd.f32 %v195, %v282
    %v284 = vpop.f32.mrb[0].mxu0
    %v285 = vpop.f32.mrb[0].mxu0
    %v286 = vpop.f32.mrb[0].mxu0
    %287 = vdwg.mxu0
    %v288 = vld [vmem:[%s4] sm:$0x1]
    %v290 = vlaneseq
    %v291 = vshrl.u32 %v290, 7
    %v292 = vsub.s32 0, %v291
    %v293 = vrot.slane %v288, %v292
    %v295 = vadd.f32 %v283, %v293
    %v296 = vmax.f32 %v295, 0.0
    %297 = vst [vmem:[#allocation2] sm:$0xff] %v296
    %v298 = vpack.c.bf16 %v296, %v296
    %v299 = vld [vmem:[#allocation7] sm:$0xf]
    %v300 = vld [vmem:[#allocation7 + $0x4] sm:$0xf]
    %v301 = vld [vmem:[#allocation7 + $0x8] sm:$0xf]
    %v302 = vld [vmem:[#allocation7 + $0xc] sm:$0xf]
    %v303 = vld [vmem:[#allocation7 + $0x10] sm:$0xf]
    %v304 = vld [vmem:[#allocation7 + $0x14] sm:$0xf]
    %v305 = vld [vmem:[#allocation7 + $0x18] sm:$0xf]
    %v306 = vld [vmem:[#allocation7 + $0x1c] sm:$0xf]
    %v307 = vld [vmem:[#allocation7 + $0x20] sm:$0xf]
    %v308 = vld [vmem:[#allocation7 + $0x24] sm:$0xf]
    %v309 = vld [vmem:[#allocation7 + $0x28] sm:$0xf]
    %v310 = vld [vmem:[#allocation7 + $0x2c] sm:$0xf]
    %v311 = vld [vmem:[#allocation7 + $0x30] sm:$0xf]
    %v312 = vld [vmem:[#allocation7 + $0x34] sm:$0xf]
    %v313 = vld [vmem:[#allocation7 + $0x38] sm:$0xf]
    %v314 = vld [vmem:[#allocation7 + $0x3c] sm:$0xf]
    %v315 = vld [vmem:[%s6] sm:$0x1]
    %v317 = vlaneseq
    %v318 = vshrl.u32 %v317, 7
    %v319 = vsub.s32 0, %v318
    %v320 = vrot.slane %v315, %v319
    %v338 = vunpack.c.l.b16 %v299
    %v339 = vunpack.c.l.b16 %v300
    %v340 = vunpack.c.l.b16 %v301
    %v341 = vunpack.c.l.b16 %v302
    %v342 = vunpack.c.l.b16 %v303
    %v343 = vunpack.c.l.b16 %v304
    %v344 = vunpack.c.l.b16 %v305
    %v345 = vunpack.c.l.b16 %v306
    %v346 = vunpack.c.l.b16 %v307
    %v347 = vunpack.c.l.b16 %v308
    %v348 = vunpack.c.l.b16 %v309
    %v349 = vunpack.c.l.b16 %v310
    %v350 = vunpack.c.l.b16 %v311
    %v351 = vunpack.c.l.b16 %v312
    %v352 = vunpack.c.l.b16 %v313
    %v353 = vunpack.c.l.b16 %v314
    %v354 = vpack.c.b16 %v339, %v338
    %v355 = vpack.c.b16 %v341, %v340
    %v356 = vpack.c.b16 %v343, %v342
    %v357 = vpack.c.b16 %v345, %v344
    %v358 = vpack.c.b16 %v347, %v346
    %v359 = vpack.c.b16 %v349, %v348
    %v360 = vpack.c.b16 %v351, %v350
    %v361 = vpack.c.b16 %v353, %v352
    %370 = vmatprep.subr.bf16.mxu0 0
    %371 = vmatpush1.bf16.msra.mxu0 %v354
    %372 = vmatprep.subr.bf16.mxu0 0
    %373 = vmatpush1.bf16.msra.mxu0 %v355
    %374 = vmatprep.subr.bf16.mxu0 0
    %375 = vmatpush1.bf16.msra.mxu0 %v356
    %376 = vmatprep.subr.bf16.mxu0 0
    %377 = vmatpush1.bf16.msra.mxu0 %v357
    %378 = vmatprep.subr.bf16.mxu0 0
    %379 = vmatpush1.bf16.msra.mxu0 %v358
    %380 = vmatprep.subr.bf16.mxu0 0
    %381 = vmatpush1.bf16.msra.mxu0 %v359
    %382 = vmatprep.subr.bf16.mxu0 0
    %383 = vmatpush1.bf16.msra.mxu0 %v360
    %384 = vmatprep.subr.bf16.mxu0 0
    %385 = vmatpush1.bf16.msra.mxu0 %v361
    %386 = vmatprep.subr.bf16.mxu0 0
    %387 = vmatpush1.bf16.msra.mxu0 0
    %388 = vmatprep.subr.bf16.mxu0 0
    %389 = vmatpush1.bf16.msra.mxu0 0
    %390 = vmatprep.subr.bf16.mxu0 0
    %391 = vmatpush1.bf16.msra.mxu0 0
    %392 = vmatprep.subr.bf16.mxu0 0
    %393 = vmatpush1.bf16.msra.mxu0 0
    %394 = vmatprep.subr.bf16.mxu0 0
    %395 = vmatpush1.bf16.msra.mxu0 0
    %396 = vmatprep.subr.bf16.mxu0 0
    %397 = vmatpush1.bf16.msra.mxu0 0
    %398 = vmatprep.subr.bf16.mxu0 0
    %399 = vmatpush1.bf16.msra.mxu0 0
    %400 = vmatprep.subr.bf16.mxu0 0
    %401 = vmatpush1.bf16.msra.mxu0 0
    %402 = vmatprep.mubr.bf16.mxu0 0
    %403 = vmatmul.mubr.bf16.gmra.mrb[0].mxu0 %v298
    %v404 = vpop.f32.mrb[0].mxu0
    %v405 = vadd.f32 %v320, %v404
    %v406 = vpop.f32.mrb[0].mxu0
    %v407 = vpop.f32.mrb[0].mxu0
    %v408 = vpop.f32.mrb[0].mxu0
    %409 = vdwg.mxu0
    %410 = vst [vmem:[%s7] sm:$0xff] %v405
    %411 = vst [vmem:[%s8] sm:$0xff] %v296
    // Predicated region
    $region46: #{_lambda_.1} parent=1 // pred_check
      _
    $region47: #{_lambda_.1} parent=1 // pred_check_branch
      %413 = sbr.rel (0) target = $region49
    $region48: #{_lambda_.1} parent=1 // pred_region
      _
    $region49: #{_lambda_.1} parent=1 // pred_fallthru
      _
    // Predicated region
    $region50: #{_lambda_.1} parent=1 // pred_check
      _
    $region51: #{_lambda_.1} parent=1 // pred_check_branch
      %415 = sbr.rel (0) target = $region53
    $region52: #{_lambda_.1} parent=1 // pred_region
      _
    $region53: #{_lambda_.1} parent=1 // pred_fallthru
      _
    // Predicated region
    $region54: #{_lambda_.1} parent=1 // pred_check
      _
    $region55: #{_lambda_.1} parent=1 // pred_check_branch
      %417 = sbr.rel (0) target = $region57
    $region56: #{_lambda_.1} parent=1 // pred_region
      _
    $region57: #{_lambda_.1} parent=1 // pred_fallthru
      _
    // Predicated region
    $region58: #{_lambda_.1} parent=1 // pred_check
      _
    $region59: #{_lambda_.1} parent=1 // pred_check_branch
      %419 = sbr.rel (0) target = $region61
    $region60: #{_lambda_.1} parent=1 // pred_region
      _
    $region61: #{_lambda_.1} parent=1 // pred_fallthru
      _
    %420 = vsyncpa [#allocation4], 1
    %421 = vsyncpa [#allocation6], 1

</llo_original>
